<compile_context>
chip_gen: v7x
topology: tpu7x:2x2x1
jax: 0.10.0
libtpu: 0.0.40
codegen_flags: <defaults>
</compile_context>

<pallas_src>
import functools

import jax
import jax.numpy as jnp
from jax.experimental import pallas as pl
from jax.experimental.pallas import tpu as pltpu


def _round_up(v, m):
    return ((v + m - 1) // m) * m


def _vmem_budget_bytes():
    """Generation-aware VMEM budget (leave headroom for Mosaic internals)."""
    default = 64 << 20
    try:
        cap = int(pltpu.get_tpu_info().vmem_capacity_bytes)
    except Exception:
        return default
    if cap <= 0:
        return default
    # ~50 MiB on v7x (64 MiB physical), ~100 MiB on v5e/v6e (128 MiB physical).
    return max(min(int(cap * 0.78), cap - (8 << 20)), 16 << 20)


def _pick_tiles(B, C, M, itemsize, usable):
    """Choose (tb, tk, tn) so the pipelined footprint fits `usable` bytes."""
    tn = 128 if M <= 128 else 256

    def footprint(tb, tk, with_acc):
        fp = (2 * tb * tk * itemsize      # x tile, double-buffered
              + 2 * tb * tn * itemsize    # output tile, double-buffered
              + tk * tn * itemsize        # in-kernel one-hot temporary
              + 2 * tn * 4)               # mapping tile, double-buffered
        if with_acc:
            fp += tb * tn * 4             # f32 accumulator scratch
        return fp

    # Batch-tile candidates, largest first.  A single full-batch tile also
    # avoids any wrapper-side padding copy of x.
    tb_cands = []
    if B <= 1024:
        tb_cands.append(B)
    for t in (1024, 512, 256, 128, 64, 32, 16, 8):
        if t < B:
            tb_cands.append(t)

    # 1) Prefer keeping the whole class axis in one tile: x's block index is
    #    then constant over the inner M loop and it is read from HBM once.
    for tb in tb_cands:
        if footprint(tb, C, with_acc=False) <= usable:
            return tb, C, tn

    # 2) Fall back to tiling the class (contraction) axis with an accumulator.
    tb = tb_cands[-1]
    tk = _round_up(C, 128)
    while tk > 128 and footprint(tb, tk, with_acc=True) > usable:
        tk = max(128, _round_up(tk // 2, 128))
    return tb, tk, tn


def _remap_kernel(map_ref, x_ref, o_ref, *scratch,
                  num_cols, mask_tail, single_k, precision):
    # map_ref: (1, tn) int32   -- current M tile of the remap table
    # x_ref:   (tb, tk)        -- current (B, K) tile of the logits
    # o_ref:   (tb, tn)        -- output tile
    # scratch: ((tb, tn) f32 accumulator,) only when the K axis is tiled
    k = pl.program_id(2)
    tk = x_ref.shape[1]
    tn = map_ref.shape[1]
    row0 = k * tk

    # One-hot gather matrix for the class rows covered by this K tile.
    # mapping value == num_cols (the dummy class) matches no in-range row -> 0.
    row_ids = jax.lax.broadcasted_iota(jnp.int32, (tk, tn), 0) + row0
    onehot = (row_ids == map_ref[...]).astype(x_ref.dtype)

    x = x_ref[...]
    if mask_tail:
        # Last K tile overshoots the class axis: zero the out-of-bounds columns
        # so neither garbage values nor the dummy-class one-hot can leak in.
        col_ids = jax.lax.broadcasted_iota(jnp.int32, x_ref.shape, 1) + row0
        x = jnp.where(col_ids < num_cols, x, jnp.zeros_like(x))

    contrib = jnp.dot(x, onehot, precision=precision,
                      preferred_element_type=jnp.float32)

    if single_k:
        o_ref[...] = contrib.astype(o_ref.dtype)
    else:
        acc_ref = scratch[0]

        @pl.when(k == 0)
        def _init():
            acc_ref[...] = jnp.zeros_like(acc_ref)

        acc_ref[...] += contrib

        @pl.when(k == pl.num_programs(2) - 1)
        def _store():
            o_ref[...] = acc_ref[...].astype(o_ref.dtype)


def remap_layer(x, mapping, *, tb=None, tk=None, tn=None, vmem_budget_bytes=None):
    """x: [B, C] float, mapping: [M] int with values in [0, C] (C == dummy class)."""
    B, C = x.shape
    M = int(mapping.shape[0])
    dtype = x.dtype
    isz = jnp.dtype(dtype).itemsize

    budget = int(vmem_budget_bytes) if vmem_budget_bytes else _vmem_budget_bytes()
    tb_auto, tk_auto, tn_auto = _pick_tiles(B, C, M, isz, budget - (4 << 20))

    # ---- tile normalization (user overrides allowed for testing) ------------
    tn = _round_up(tn if tn is not None else tn_auto, 128)
    tk = tk if tk is not None else tk_auto
    if tk >= C:
        tk = C                      # full class axis: block dim == array dim
    else:
        tk = _round_up(tk, 128)
        if tk >= C:
            tk = C
    tb = tb if tb is not None else tb_auto
    if tb >= B:
        tb = B                      # full batch: block dim == array dim
    elif tb % 8:
        tb = _round_up(tb, 8)

    n_k = -(-C // tk)
    n_m = _round_up(M, tn) // tn
    M_pad = n_m * tn
    mask_tail = n_k * tk > C

    # ---- inputs: pad the batch axis only if the tile doesn't divide it ------
    if B % tb == 0:
        B_pad, x_in = B, x
    else:
        # TODO(synk): this materializes one padded copy of x (rare fallback).
        B_pad = _round_up(B, tb)
        x_in = jnp.zeros((B_pad, C), dtype).at[:B, :].set(x)

    # Pad the mapping with the dummy class id -> padded output columns are 0.
    map_p = jnp.full((1, M_pad), C, dtype=jnp.int32).at[0, :M].set(
        mapping.astype(jnp.int32))

    grid = (B_pad // tb, n_m, n_k)   # B outer (x stays resident), K innermost

    # ---- VMEM accounting (no double counting) --------------------------------
    footprint = (2 * tb * tk * isz + 2 * tb * tn * isz
                 + tk * tn * isz + 2 * tn * 4)
    if n_k > 1:
        footprint += tb * tn * 4
    vmem_limit = int(max(footprint + (4 << 20), 32 << 20))
    vmem_limit = int(min(vmem_limit, max(budget, footprint + (4 << 20))))

    def _cost(precision):
        passes = {jax.lax.Precision.HIGHEST: 6,
                  jax.lax.Precision.HIGH: 3}.get(precision, 1)
        x_reads = 1 if n_k == 1 else n_m   # x re-streamed per M tile only if K-tiled
        return pl.CostEstimate(
            flops=passes * 2 * B_pad * C * M_pad,
            transcendentals=0,
            bytes_accessed=(x_reads * B_pad * C * isz
                            + B_pad * M_pad * isz + M_pad * 4))

    def _run(precision):
        kernel = functools.partial(
            _remap_kernel, num_cols=C, mask_tail=mask_tail,
            single_k=(n_k == 1), precision=precision)
        scratch = [] if n_k == 1 else [pltpu.VMEM((tb, tn), jnp.float32)]
        return pl.pallas_call(
            kernel,
            out_shape=jax.ShapeDtypeStruct((B_pad, M_pad), dtype),
            grid_spec=pltpu.PrefetchScalarGridSpec(
                num_scalar_prefetch=0,
                grid=grid,
                in_specs=[
                    pl.BlockSpec((1, tn), lambda b, m, k: (0, m)),   # mapping tile
                    pl.BlockSpec((tb, tk), lambda b, m, k: (b, k)),  # x tile
                ],
                out_specs=pl.BlockSpec((tb, tn), lambda b, m, k: (b, m)),
                scratch_shapes=scratch,
            ),
            compiler_params=pltpu.CompilerParams(
                dimension_semantics=("parallel", "parallel", "arbitrary"),
                vmem_limit_bytes=vmem_limit,
            ),
            cost_estimate=_cost(precision),
        )(map_p, x_in)

    if dtype == jnp.float32:
        # Invariant: an f32 gather needs >= bf16_3x (Precision.HIGH) to be
        # exact with a 0/1 RHS.  Fall back to HIGHEST if this Mosaic build only
        # supports DEFAULT/HIGHEST for the dot precision.
        last_err = None
        for prec in (jax.lax.Precision.HIGH, jax.lax.Precision.HIGHEST):
            try:
                out_p = _run(prec)
                break
            except Exception as e:   # lowering NotImplementedError, etc.
                last_err = e
        else:
            raise last_err
    else:
        out_p = _run(jax.lax.Precision.DEFAULT)   # bf16: single pass is exact

    return out_p[:B, :M]


if __name__ == "__main__":
    key = jax.random.PRNGKey(0)
    k1, k2, k3, k4, k5 = jax.random.split(key, 5)

    def reference(x, mapping):
        b = x.shape[0]
        expand_x = jnp.concatenate([x, jnp.zeros((b, 1), x.dtype)], axis=1)
        return expand_x[:, mapping]

    # ---- Case 1: tiny single-tile shape, includes the dummy class id (== C) --
    B, C, M = 8, 16, 24
    mapping = jnp.array([(i * 7) % (C + 1) for i in range(M)], dtype=jnp.int32)
    x = jax.random.normal(k1, (B, C), dtype=jnp.float32)
    out = jax.block_until_ready(remap_layer(x, mapping))
    assert out.shape == (B, M)
    assert jnp.allclose(out, reference(x, mapping), atol=1e-6, rtol=1e-6), \
        "mismatch vs reference (case 1)"

    # ---- Case 2: multiple M tiles, x tile stays VMEM-resident (tn=128) -------
    B2, C2, M2 = 24, 40, 200
    mapping2 = jax.random.randint(k2, (M2,), 0, C2 + 1).astype(jnp.int32)
    x2 = jax.random.normal(k3, (B2, C2), dtype=jnp.float32)
    out2 = jax.block_until_ready(remap_layer(x2, mapping2, tn=128))
    assert out2.shape == (B2, M2)
    assert jnp.allclose(out2, reference(x2, mapping2), atol=1e-6, rtol=1e-6), \
        "mismatch vs reference (case 2)"

    # ---- Case 3: forced class-axis (K) tiling -> accumulator + tail masking --
    B3, C3, M3 = 16, 300, 96
    mapping3 = jax.random.randint(k4, (M3,), 0, C3 + 1).astype(jnp.int32)
    x3 = jax.random.normal(k5, (B3, C3), dtype=jnp.float32)
    out3 = jax.block_until_ready(remap_layer(x3, mapping3, tk=128))
    assert out3.shape == (B3, M3)
    assert jnp.allclose(out3, reference(x3, mapping3), atol=1e-6, rtol=1e-6), \
        "mismatch vs reference (case 3)"

    # ---- Case 4: bf16 logits (single-pass MXU gather) -------------------------
    x4 = x.astype(jnp.bfloat16)
    out4 = jax.block_until_ready(remap_layer(x4, mapping))
    ref4 = reference(x4, mapping)
    assert out4.shape == (B, M) and out4.dtype == jnp.bfloat16
    assert jnp.allclose(out4.astype(jnp.float32), ref4.astype(jnp.float32),
                        atol=1e-2, rtol=1e-2), "mismatch vs reference (case 4)"

    print("KERNEL_OK")
</pallas_src>

<mosaic_0001>
module attributes {stable_mosaic.version = 11 : i64} {
  func.func @_remap_kernel(%arg0: i32, %arg1: i32, %arg2: i32, %arg3: memref<1x128xi32, #tpu.memory_space<vmem>>, %arg4: memref<8x16xf32, #tpu.memory_space<vmem>>, %arg5: memref<8x128xf32, #tpu.memory_space<vmem>>) attributes {dimension_semantics = [#tpu.dimension_semantics<parallel>, #tpu.dimension_semantics<parallel>, #tpu.dimension_semantics<arbitrary>], iteration_bounds = array<i64: 1, 1, 1>, scalar_prefetch = 0 : i64, scratch_operands = 0 : i64, tpu.core_type = #tpu.core_type<tc>, window_params = [{transform_indices = @transform_0, window_bounds = array<i64: 1, 128>}, {transform_indices = @transform_1, window_bounds = array<i64: 8, 16>}, {transform_indices = @transform_2, window_bounds = array<i64: 8, 128>}]} {
    %c16_i32 = arith.constant 16 : i32
    %0 = arith.muli %arg2, %c16_i32 : i32
    %1 = tpu.iota {dimensions = array<i32: 0>} : vector<16x128xi32>
    %2 = vector.broadcast %0 : i32 to vector<16x128xi32>
    %3 = arith.addi %1, %2 : vector<16x128xi32>
    %c0 = arith.constant 0 : index
    %c0_0 = arith.constant 0 : index
    %4 = vector.load %arg3[%c0, %c0_0] : memref<1x128xi32, #tpu.memory_space<vmem>>, vector<1x128xi32>
    %5 = vector.broadcast %4 : vector<1x128xi32> to vector<16x128xi32>
    %6 = arith.cmpi eq, %3, %5 : vector<16x128xi32>
    %7 = arith.extui %6 : vector<16x128xi1> to vector<16x128xi32>
    %8 = arith.sitofp %7 : vector<16x128xi32> to vector<16x128xf32>
    %c0_1 = arith.constant 0 : index
    %c0_2 = arith.constant 0 : index
    %9 = vector.load %arg4[%c0_1, %c0_2] : memref<8x16xf32, #tpu.memory_space<vmem>>, vector<8x16xf32>
    %cst = arith.constant dense<0.000000e+00> : vector<8x128xf32>
    %10 = tpu.matmul %9, %8, %cst {dimension_numbers = #tpu.dot_dimension_numbers<[1], [0], [0], [1], [0, 0, 1, 1], [], []>, precision = #tpu.contract_precision<fp32>} : vector<8x16xf32>, vector<16x128xf32>, vector<8x128xf32> -> vector<8x128xf32>
    %c0_3 = arith.constant 0 : index
    %c0_4 = arith.constant 0 : index
    %11 = vector.load %arg5[%c0_3, %c0_4] : memref<8x128xf32, #tpu.memory_space<vmem>>, vector<8x128xf32>
    tpu.vector_store %arg5[%c0_3, %c0_4], %10 {strides = array<i32>} : memref<8x128xf32, #tpu.memory_space<vmem>>, vector<8x128xf32>,
    return
  }
  func.func @transform_0(%arg0: i32, %arg1: i32, %arg2: i32) -> (i32, i32) {
    %c0_i32 = arith.constant 0 : i32
    %c0_i32_0 = arith.constant 0 : i32
    return %c0_i32, %arg1 : i32, i32
  }
  func.func @transform_1(%arg0: i32, %arg1: i32, %arg2: i32) -> (i32, i32) {
    %c0_i32 = arith.constant 0 : i32
    return %arg0, %arg2 : i32, i32
  }
  func.func @transform_2(%arg0: i32, %arg1: i32, %arg2: i32) -> (i32, i32) {
    %c0_i32 = arith.constant 0 : i32
    return %arg0, %arg1 : i32, i32
  }
}

</mosaic_0001>

<llo_original>
// kernel: tpu_custom_call.1
$region0: #{tpu_custom_call.1}
  #allocation0 [shape = 'u32[]', space=smem, size = 0x4, offset = 0x4, fixed_abs, tag = 'smem constant byte address 0x4 - core index']
  #allocation1 [shape = 'u32[144,128]{1,0:T(1,128)}', space=vmem, size = 0x12000, scoped, tag = 'internal scratch']
  %s0 = inlined_call_operand.hbm [shape: s32[1,128], index: 0, kind: input, shape index: {}]
  %s1 = inlined_call_operand.hbm [shape: f32[8,16], index: 1, kind: input, shape index: {}]
  %s2 = inlined_call_operand.hbm [shape: f32[8,128], index: 2, kind: output, shape index: {}]
  %s3 = sld [smem:[#allocation0]]
  $region26: #{tpu_custom_call.1} parent=0
    _
  %s5 = ssub.s32 1, %s3
  %s6 = scalar_select 0, %s5, %s3
  $region1: #{tpu_custom_call.1} parent=0
    #allocation2 [shape = 'u8[512]{0}', space=vmem, size = 0x400, scoped, tag = 'input window, operand 0, single buffered']
    #allocation3 [shape = 's32[1]{0}', space=sflag, size = 0x4, scoped, tag = 'scoped memory for tpu_custom_call.1']
    #allocation4 [shape = 's32[1]{0}', space=sflag, size = 0x4, scoped, tag = 'scoped memory for tpu_custom_call.1']
    #allocation5 [shape = 'u8[4096]{0}', space=vmem, size = 0x1000, scoped, tag = 'input window, operand 1, single buffered']
    #allocation6 [shape = 's32[1]{0}', space=sflag, size = 0x4, scoped, tag = 'scoped memory for tpu_custom_call.1']
    #allocation7 [shape = 'u8[4096]{0}', space=vmem, size = 0x1000, scoped, tag = 'output window, operand 0, single buffered']
    %7 = vsyncpa [#allocation3], 0
    %8 = vsyncpa [#allocation6], 0
    %9 = vsyncpa [#allocation4], 0
    // Predicated region
    $region2: #{tpu_custom_call.1} parent=1 // pred_check
      _
    $region3: #{tpu_custom_call.1} parent=1 // pred_check_branch
      %11 = sbr.rel (0) target = $region5
    $region4: #{tpu_custom_call.1} parent=1 // pred_region
      %s13 = ssub.s32 16, 16
      %14 = vsyncadd [#allocation3], %s13
      %s16 = sshll.u32 [#allocation2], 4
      %s17 = int_to_ptr.vmem [resolvable:$true] %s16
      %19 = dma.hbm_to_vmem [thread:$0]  %s0, 16, %s17, [#allocation3]
    $region5: #{tpu_custom_call.1} parent=1 // pred_fallthru
      _
    // Predicated region
    $region6: #{tpu_custom_call.1} parent=1 // pred_check
      _
    $region7: #{tpu_custom_call.1} parent=1 // pred_check_branch
      %21 = sbr.rel (0) target = $region9
    $region8: #{tpu_custom_call.1} parent=1 // pred_region
      %s23 = ssub.s32 128, 128
      %24 = vsyncadd [#allocation6], %s23
      %s26 = sshll.u32 [#allocation5], 4
      %s27 = int_to_ptr.vmem [resolvable:$true] %s26
      %29 = dma.hbm_to_vmem [thread:$0]  %s1, 128, %s27, [#allocation6]
    $region9: #{tpu_custom_call.1} parent=1 // pred_fallthru
      _
    // Predicated region
    $region10: #{tpu_custom_call.1} parent=1 // pred_check
      _
    $region11: #{tpu_custom_call.1} parent=1 // pred_check_branch
      %31 = sbr.rel (0) target = $region13
    $region12: #{tpu_custom_call.1} parent=1 // pred_region
      %32 = dma.done [#allocation3], 16
    $region13: #{tpu_custom_call.1} parent=1 // pred_fallthru
      _
    // Predicated region
    $region14: #{tpu_custom_call.1} parent=1 // pred_check
      _
    $region15: #{tpu_custom_call.1} parent=1 // pred_check_branch
      %34 = sbr.rel (0) target = $region17
    $region16: #{tpu_custom_call.1} parent=1 // pred_region
      %35 = dma.done [#allocation6], 128
    $region17: #{tpu_custom_call.1} parent=1 // pred_fallthru
      _
    %s36 = smul.u32 0, 16
    %v37 = vlaneseq
    %v38 = vshrl.u32 %v37, 7
    %v39 = vadd.s32 %v38, 8
    %v40 = vstv %s36
    %v41 = vadd.s32 %v38, %v40
    %v42 = vadd.s32 %v39, %v40
    %v43 = vld [vmem:[#allocation2] sm:$0x1]
    %v44 = vlaneseq
    %v45 = vshrl.u32 %v44, 7
    %v46 = vsub.s32 0, %v45
    %v47 = vrot.slane %v43, %v46
    %vm48 = vcmp.eq.s32.totalorder %v41, %v47
    %vm49 = vcmp.eq.s32.totalorder %v42, %v47
    %v50 = vsel %vm48, 1, 0
    %v51 = vsel %vm49, 1, 0
    %v52 = vcvt.s32.f32 %v50
    %v53 = vcvt.s32.f32 %v51
    %v54 = vld [vmem:[#allocation5] sm:$0xff]
    %vm55 = vcmask 130048
    %v57 = vsel %vm55, %v54, 0
    %59 = vmatprep.subr.mxu0 0.0
    %v60 = vand.u32 %v52, 4294901760
    %61 = vmatpush1.msra.mxu0 %v60
    %62 = vmatprep.subr.mxu0 0.0
    %v63 = vand.u32 %v53, 4294901760
    %64 = vmatpush1.msra.mxu0 %v63
    %65 = vmatprep.subr.mxu0 0.0
    %66 = vmatpush1.msra.mxu0 0.0
    %67 = vmatprep.subr.mxu0 0.0
    %68 = vmatpush1.msra.mxu0 0.0
    %69 = vmatprep.subr.mxu0 0.0
    %70 = vmatpush1.msra.mxu0 0.0
    %71 = vmatprep.subr.mxu0 0.0
    %72 = vmatpush1.msra.mxu0 0.0
    %73 = vmatprep.subr.mxu0 0.0
    %74 = vmatpush1.msra.mxu0 0.0
    %75 = vmatprep.subr.mxu0 0.0
    %76 = vmatpush1.msra.mxu0 0.0
    %77 = vmatprep.subr.mxu0 0.0
    %78 = vmatpush1.msra.mxu0 0.0
    %79 = vmatprep.subr.mxu0 0.0
    %80 = vmatpush1.msra.mxu0 0.0
    %81 = vmatprep.subr.mxu0 0.0
    %82 = vmatpush1.msra.mxu0 0.0
    %83 = vmatprep.subr.mxu0 0.0
    %84 = vmatpush1.msra.mxu0 0.0
    %85 = vmatprep.subr.mxu0 0.0
    %86 = vmatpush1.msra.mxu0 0.0
    %87 = vmatprep.subr.mxu0 0.0
    %88 = vmatpush1.msra.mxu0 0.0
    %89 = vmatprep.subr.mxu0 0.0
    %90 = vmatpush1.msra.mxu0 0.0
    %91 = vmatprep.subr.mxu0 0.0
    %92 = vmatpush1.msra.mxu0 0.0
    %93 = vmatprep.subr.mxu0 0.0
    %94 = vmatpush1.msra.mxu0 0.0
    %95 = vmatprep.subr.mxu0 0.0
    %96 = vmatpush1.msra.mxu0 0.0
    %97 = vmatprep.subr.mxu0 0.0
    %98 = vmatpush1.msra.mxu0 0.0
    %99 = vmatprep.subr.mxu0 0.0
    %100 = vmatpush1.msra.mxu0 0.0
    %101 = vmatprep.subr.mxu0 0.0
    %102 = vmatpush1.msra.mxu0 0.0
    %103 = vmatprep.subr.mxu0 0.0
    %104 = vmatpush1.msra.mxu0 0.0
    %105 = vmatprep.subr.mxu0 0.0
    %106 = vmatpush1.msra.mxu0 0.0
    %107 = vmatprep.subr.mxu0 0.0
    %108 = vmatpush1.msra.mxu0 0.0
    %109 = vmatprep.subr.mxu0 0.0
    %110 = vmatpush1.msra.mxu0 0.0
    %111 = vmatprep.subr.mxu0 0.0
    %112 = vmatpush1.msra.mxu0 0.0
    %113 = vmatprep.subr.mxu0 0.0
    %114 = vmatpush1.msra.mxu0 0.0
    %115 = vmatprep.subr.mxu0 0.0
    %116 = vmatpush1.msra.mxu0 0.0
    %117 = vmatprep.subr.mxu0 0.0
    %118 = vmatpush1.msra.mxu0 0.0
    %119 = vmatprep.subr.mxu0 0.0
    %120 = vmatpush1.msra.mxu0 0.0
    %121 = vmatprep.subr.mxu0 0.0
    %122 = vmatpush1.msra.mxu0 0.0
    %123 = vmatprep.subr.mxu0 0.0
    %124 = vmatpush1.msra.mxu0 0.0
    %125 = vmatprep.mubr.f32.mxu0 0.0
    %v126 = vand.u32 %v57, 4294901760
    %v127 = vsub.f32 %v57, %v126
    %v128 = vand.u32 %v127, 4294901760
    %v129 = vsub.f32 %v127, %v128
    %v130 = vand.u32 %v129, 4294901760
    %131 = vmatmul.mubr.f32.gmra.mrb[0].mxu0 %v130
    %v132 = vpop.f32.mrb[0].mxu0
    %v133 = vadd.f32 0.0, %v132
    %v134 = vpop.f32.mrb[0].mxu0
    %135 = vdwg.mxu0
    %136 = vmatprep.subr.mxu0 0.0
    %v137 = vand.u32 %v52, 4294901760
    %v138 = vsub.f32 %v52, %v137
    %v139 = vand.u32 %v138, 4294901760
    %v140 = vsub.f32 %v138, %v139
    %v141 = vand.u32 %v140, 4294901760
    %142 = vmatpush1.msra.mxu0 %v141
    %143 = vmatprep.subr.mxu0 0.0
    %v144 = vand.u32 %v53, 4294901760
    %v145 = vsub.f32 %v53, %v144
    %v146 = vand.u32 %v145, 4294901760
    %v147 = vsub.f32 %v145, %v146
    %v148 = vand.u32 %v147, 4294901760
    %149 = vmatpush1.msra.mxu0 %v148
    %150 = vmatprep.subr.mxu0 0.0
    %151 = vmatpush1.msra.mxu0 0.0
    %152 = vmatprep.subr.mxu0 0.0
    %153 = vmatpush1.msra.mxu0 0.0
    %154 = vmatprep.subr.mxu0 0.0
    %155 = vmatpush1.msra.mxu0 0.0
    %156 = vmatprep.subr.mxu0 0.0
    %157 = vmatpush1.msra.mxu0 0.0
    %158 = vmatprep.subr.mxu0 0.0
    %159 = vmatpush1.msra.mxu0 0.0
    %160 = vmatprep.subr.mxu0 0.0
    %161 = vmatpush1.msra.mxu0 0.0
    %162 = vmatprep.subr.mxu0 0.0
    %163 = vmatpush1.msra.mxu0 0.0
    %164 = vmatprep.subr.mxu0 0.0
    %165 = vmatpush1.msra.mxu0 0.0
    %166 = vmatprep.subr.mxu0 0.0
    %167 = vmatpush1.msra.mxu0 0.0
    %168 = vmatprep.subr.mxu0 0.0
    %169 = vmatpush1.msra.mxu0 0.0
    %170 = vmatprep.subr.mxu0 0.0
    %171 = vmatpush1.msra.mxu0 0.0
    %172 = vmatprep.subr.mxu0 0.0
    %173 = vmatpush1.msra.mxu0 0.0
    %174 = vmatprep.subr.mxu0 0.0
    %175 = vmatpush1.msra.mxu0 0.0
    %176 = vmatprep.subr.mxu0 0.0
    %177 = vmatpush1.msra.mxu0 0.0
    %178 = vmatprep.subr.mxu0 0.0
    %179 = vmatpush1.msra.mxu0 0.0
    %180 = vmatprep.subr.mxu0 0.0
    %181 = vmatpush1.msra.mxu0 0.0
    %182 = vmatprep.subr.mxu0 0.0
    %183 = vmatpush1.msra.mxu0 0.0
    %184 = vmatprep.subr.mxu0 0.0
    %185 = vmatpush1.msra.mxu0 0.0
    %186 = vmatprep.subr.mxu0 0.0
    %187 = vmatpush1.msra.mxu0 0.0
    %188 = vmatprep.subr.mxu0 0.0
    %189 = vmatpush1.msra.mxu0 0.0
    %190 = vmatprep.subr.mxu0 0.0
    %191 = vmatpush1.msra.mxu0 0.0
    %192 = vmatprep.subr.mxu0 0.0
    %193 = vmatpush1.msra.mxu0 0.0
    %194 = vmatprep.subr.mxu0 0.0
    %195 = vmatpush1.msra.mxu0 0.0
    %196 = vmatprep.subr.mxu0 0.0
    %197 = vmatpush1.msra.mxu0 0.0
    %198 = vmatprep.subr.mxu0 0.0
    %199 = vmatpush1.msra.mxu0 0.0
    %200 = vmatprep.subr.mxu0 0.0
    %201 = vmatpush1.msra.mxu0 0.0
    %202 = vmatprep.subr.mxu0 0.0
    %203 = vmatpush1.msra.mxu0 0.0
    %204 = vmatprep.subr.mxu0 0.0
    %205 = vmatpush1.msra.mxu0 0.0
    %206 = vmatprep.subr.mxu0 0.0
    %207 = vmatpush1.msra.mxu0 0.0
    %208 = vmatprep.subr.mxu0 0.0
    %209 = vmatpush1.msra.mxu0 0.0
    %210 = vmatprep.mubr.f32.mxu0 0.0
    %v211 = vand.u32 %v57, 4294901760
    %212 = vmatmul.mubr.f32.gmra.mrb[0].mxu0 %v211
    %v213 = vpop.f32.mrb[0].mxu0
    %v214 = vadd.f32 %v133, %v213
    %v215 = vpop.f32.mrb[0].mxu0
    %216 = vdwg.mxu0
    %217 = vmatprep.subr.mxu0 0.0
    %v218 = vand.u32 %v52, 4294901760
    %v219 = vsub.f32 %v52, %v218
    %220 = vmatpush1.msra.mxu0 %v219
    %221 = vmatprep.subr.mxu0 0.0
    %v222 = vand.u32 %v53, 4294901760
    %v223 = vsub.f32 %v53, %v222
    %224 = vmatpush1.msra.mxu0 %v223
    %225 = vmatprep.subr.mxu0 0.0
    %226 = vmatpush1.msra.mxu0 0.0
    %227 = vmatprep.subr.mxu0 0.0
    %228 = vmatpush1.msra.mxu0 0.0
    %229 = vmatprep.subr.mxu0 0.0
    %230 = vmatpush1.msra.mxu0 0.0
    %231 = vmatprep.subr.mxu0 0.0
    %232 = vmatpush1.msra.mxu0 0.0
    %233 = vmatprep.subr.mxu0 0.0
    %234 = vmatpush1.msra.mxu0 0.0
    %235 = vmatprep.subr.mxu0 0.0
    %236 = vmatpush1.msra.mxu0 0.0
    %237 = vmatprep.subr.mxu0 0.0
    %238 = vmatpush1.msra.mxu0 0.0
    %239 = vmatprep.subr.mxu0 0.0
    %240 = vmatpush1.msra.mxu0 0.0
    %241 = vmatprep.subr.mxu0 0.0
    %242 = vmatpush1.msra.mxu0 0.0
    %243 = vmatprep.subr.mxu0 0.0
    %244 = vmatpush1.msra.mxu0 0.0
    %245 = vmatprep.subr.mxu0 0.0
    %246 = vmatpush1.msra.mxu0 0.0
    %247 = vmatprep.subr.mxu0 0.0
    %248 = vmatpush1.msra.mxu0 0.0
    %249 = vmatprep.subr.mxu0 0.0
    %250 = vmatpush1.msra.mxu0 0.0
    %251 = vmatprep.subr.mxu0 0.0
    %252 = vmatpush1.msra.mxu0 0.0
    %253 = vmatprep.subr.mxu0 0.0
    %254 = vmatpush1.msra.mxu0 0.0
    %255 = vmatprep.subr.mxu0 0.0
    %256 = vmatpush1.msra.mxu0 0.0
    %257 = vmatprep.subr.mxu0 0.0
    %258 = vmatpush1.msra.mxu0 0.0
    %259 = vmatprep.subr.mxu0 0.0
    %260 = vmatpush1.msra.mxu0 0.0
    %261 = vmatprep.subr.mxu0 0.0
    %262 = vmatpush1.msra.mxu0 0.0
    %263 = vmatprep.subr.mxu0 0.0
    %264 = vmatpush1.msra.mxu0 0.0
    %265 = vmatprep.subr.mxu0 0.0
    %266 = vmatpush1.msra.mxu0 0.0
    %267 = vmatprep.subr.mxu0 0.0
    %268 = vmatpush1.msra.mxu0 0.0
    %269 = vmatprep.subr.mxu0 0.0
    %270 = vmatpush1.msra.mxu0 0.0
    %271 = vmatprep.subr.mxu0 0.0
    %272 = vmatpush1.msra.mxu0 0.0
    %273 = vmatprep.subr.mxu0 0.0
    %274 = vmatpush1.msra.mxu0 0.0
    %275 = vmatprep.subr.mxu0 0.0
    %276 = vmatpush1.msra.mxu0 0.0
    %277 = vmatprep.subr.mxu0 0.0
    %278 = vmatpush1.msra.mxu0 0.0
    %279 = vmatprep.subr.mxu0 0.0
    %280 = vmatpush1.msra.mxu0 0.0
    %281 = vmatprep.subr.mxu0 0.0
    %282 = vmatpush1.msra.mxu0 0.0
    %283 = vmatprep.subr.mxu0 0.0
    %284 = vmatpush1.msra.mxu0 0.0
    %285 = vmatprep.mubr.f32.mxu0 0.0
    %v286 = vand.u32 %v57, 4294901760
    %v287 = vsub.f32 %v57, %v286
    %288 = vmatmul.mubr.f32.gmra.mrb[0].mxu0 %v287
    %v289 = vpop.f32.mrb[0].mxu0
    %v290 = vadd.f32 %v214, %v289
    %v291 = vpop.f32.mrb[0].mxu0
    %292 = vdwg.mxu0
    %293 = vmatprep.subr.mxu0 0.0
    %v294 = vand.u32 %v52, 4294901760
    %295 = vmatpush1.msra.mxu0 %v294
    %296 = vmatprep.subr.mxu0 0.0
    %v297 = vand.u32 %v53, 4294901760
    %298 = vmatpush1.msra.mxu0 %v297
    %299 = vmatprep.subr.mxu0 0.0
    %300 = vmatpush1.msra.mxu0 0.0
    %301 = vmatprep.subr.mxu0 0.0
    %302 = vmatpush1.msra.mxu0 0.0
    %303 = vmatprep.subr.mxu0 0.0
    %304 = vmatpush1.msra.mxu0 0.0
    %305 = vmatprep.subr.mxu0 0.0
    %306 = vmatpush1.msra.mxu0 0.0
    %307 = vmatprep.subr.mxu0 0.0
    %308 = vmatpush1.msra.mxu0 0.0
    %309 = vmatprep.subr.mxu0 0.0
    %310 = vmatpush1.msra.mxu0 0.0
    %311 = vmatprep.subr.mxu0 0.0
    %312 = vmatpush1.msra.mxu0 0.0
    %313 = vmatprep.subr.mxu0 0.0
    %314 = vmatpush1.msra.mxu0 0.0
    %315 = vmatprep.subr.mxu0 0.0
    %316 = vmatpush1.msra.mxu0 0.0
    %317 = vmatprep.subr.mxu0 0.0
    %318 = vmatpush1.msra.mxu0 0.0
    %319 = vmatprep.subr.mxu0 0.0
    %320 = vmatpush1.msra.mxu0 0.0
    %321 = vmatprep.subr.mxu0 0.0
    %322 = vmatpush1.msra.mxu0 0.0
    %323 = vmatprep.subr.mxu0 0.0
    %324 = vmatpush1.msra.mxu0 0.0
    %325 = vmatprep.subr.mxu0 0.0
    %326 = vmatpush1.msra.mxu0 0.0
    %327 = vmatprep.subr.mxu0 0.0
    %328 = vmatpush1.msra.mxu0 0.0
    %329 = vmatprep.subr.mxu0 0.0
    %330 = vmatpush1.msra.mxu0 0.0
    %331 = vmatprep.subr.mxu0 0.0
    %332 = vmatpush1.msra.mxu0 0.0
    %333 = vmatprep.subr.mxu0 0.0
    %334 = vmatpush1.msra.mxu0 0.0
    %335 = vmatprep.subr.mxu0 0.0
    %336 = vmatpush1.msra.mxu0 0.0
    %337 = vmatprep.subr.mxu0 0.0
    %338 = vmatpush1.msra.mxu0 0.0
    %339 = vmatprep.subr.mxu0 0.0
    %340 = vmatpush1.msra.mxu0 0.0
    %341 = vmatprep.subr.mxu0 0.0
    %342 = vmatpush1.msra.mxu0 0.0
    %343 = vmatprep.subr.mxu0 0.0
    %344 = vmatpush1.msra.mxu0 0.0
    %345 = vmatprep.subr.mxu0 0.0
    %346 = vmatpush1.msra.mxu0 0.0
    %347 = vmatprep.subr.mxu0 0.0
    %348 = vmatpush1.msra.mxu0 0.0
    %349 = vmatprep.subr.mxu0 0.0
    %350 = vmatpush1.msra.mxu0 0.0
    %351 = vmatprep.subr.mxu0 0.0
    %352 = vmatpush1.msra.mxu0 0.0
    %353 = vmatprep.subr.mxu0 0.0
    %354 = vmatpush1.msra.mxu0 0.0
    %355 = vmatprep.subr.mxu0 0.0
    %356 = vmatpush1.msra.mxu0 0.0
    %357 = vmatprep.subr.mxu0 0.0
    %358 = vmatpush1.msra.mxu0 0.0
    %359 = vmatprep.mubr.f32.mxu0 0.0
    %v360 = vand.u32 %v57, 4294901760
    %v361 = vsub.f32 %v57, %v360
    %v362 = vand.u32 %v361, 4294901760
    %363 = vmatmul.mubr.f32.gmra.mrb[0].mxu0 %v362
    %v364 = vpop.f32.mrb[0].mxu0
    %v365 = vadd.f32 %v290, %v364
    %v366 = vpop.f32.mrb[0].mxu0
    %367 = vdwg.mxu0
    %368 = vmatprep.subr.mxu0 0.0
    %v369 = vand.u32 %v52, 4294901760
    %v370 = vsub.f32 %v52, %v369
    %v371 = vand.u32 %v370, 4294901760
    %372 = vmatpush1.msra.mxu0 %v371
    %373 = vmatprep.subr.mxu0 0.0
    %v374 = vand.u32 %v53, 4294901760
    %v375 = vsub.f32 %v53, %v374
    %v376 = vand.u32 %v375, 4294901760
    %377 = vmatpush1.msra.mxu0 %v376
    %378 = vmatprep.subr.mxu0 0.0
    %379 = vmatpush1.msra.mxu0 0.0
    %380 = vmatprep.subr.mxu0 0.0
    %381 = vmatpush1.msra.mxu0 0.0
    %382 = vmatprep.subr.mxu0 0.0
    %383 = vmatpush1.msra.mxu0 0.0
    %384 = vmatprep.subr.mxu0 0.0
    %385 = vmatpush1.msra.mxu0 0.0
    %386 = vmatprep.subr.mxu0 0.0
    %387 = vmatpush1.msra.mxu0 0.0
    %388 = vmatprep.subr.mxu0 0.0
    %389 = vmatpush1.msra.mxu0 0.0
    %390 = vmatprep.subr.mxu0 0.0
    %391 = vmatpush1.msra.mxu0 0.0
    %392 = vmatprep.subr.mxu0 0.0
    %393 = vmatpush1.msra.mxu0 0.0
    %394 = vmatprep.subr.mxu0 0.0
    %395 = vmatpush1.msra.mxu0 0.0
    %396 = vmatprep.subr.mxu0 0.0
    %397 = vmatpush1.msra.mxu0 0.0
    %398 = vmatprep.subr.mxu0 0.0
    %399 = vmatpush1.msra.mxu0 0.0
    %400 = vmatprep.subr.mxu0 0.0
    %401 = vmatpush1.msra.mxu0 0.0
    %402 = vmatprep.subr.mxu0 0.0
    %403 = vmatpush1.msra.mxu0 0.0
    %404 = vmatprep.subr.mxu0 0.0
    %405 = vmatpush1.msra.mxu0 0.0
    %406 = vmatprep.subr.mxu0 0.0
    %407 = vmatpush1.msra.mxu0 0.0
    %408 = vmatprep.subr.mxu0 0.0
    %409 = vmatpush1.msra.mxu0 0.0
    %410 = vmatprep.subr.mxu0 0.0
    %411 = vmatpush1.msra.mxu0 0.0
    %412 = vmatprep.subr.mxu0 0.0
    %413 = vmatpush1.msra.mxu0 0.0
    %414 = vmatprep.subr.mxu0 0.0
    %415 = vmatpush1.msra.mxu0 0.0
    %416 = vmatprep.subr.mxu0 0.0
    %417 = vmatpush1.msra.mxu0 0.0
    %418 = vmatprep.subr.mxu0 0.0
    %419 = vmatpush1.msra.mxu0 0.0
    %420 = vmatprep.subr.mxu0 0.0
    %421 = vmatpush1.msra.mxu0 0.0
    %422 = vmatprep.subr.mxu0 0.0
    %423 = vmatpush1.msra.mxu0 0.0
    %424 = vmatprep.subr.mxu0 0.0
    %425 = vmatpush1.msra.mxu0 0.0
    %426 = vmatprep.subr.mxu0 0.0
    %427 = vmatpush1.msra.mxu0 0.0
    %428 = vmatprep.subr.mxu0 0.0
    %429 = vmatpush1.msra.mxu0 0.0
    %430 = vmatprep.subr.mxu0 0.0
    %431 = vmatpush1.msra.mxu0 0.0
    %432 = vmatprep.subr.mxu0 0.0
    %433 = vmatpush1.msra.mxu0 0.0
    %434 = vmatprep.subr.mxu0 0.0
    %435 = vmatpush1.msra.mxu0 0.0
    %436 = vmatprep.subr.mxu0 0.0
    %437 = vmatpush1.msra.mxu0 0.0
    %438 = vmatprep.mubr.f32.mxu0 0.0
    %v439 = vand.u32 %v57, 4294901760
    %440 = vmatmul.mubr.f32.gmra.mrb[0].mxu0 %v439
    %v441 = vpop.f32.mrb[0].mxu0
    %v442 = vadd.f32 %v365, %v441
    %v443 = vpop.f32.mrb[0].mxu0
    %444 = vdwg.mxu0
    %445 = vmatprep.subr.mxu0 0.0
    %v446 = vand.u32 %v52, 4294901760
    %447 = vmatpush1.msra.mxu0 %v446
    %448 = vmatprep.subr.mxu0 0.0
    %v449 = vand.u32 %v53, 4294901760
    %450 = vmatpush1.msra.mxu0 %v449
    %451 = vmatprep.subr.mxu0 0.0
    %452 = vmatpush1.msra.mxu0 0.0
    %453 = vmatprep.subr.mxu0 0.0
    %454 = vmatpush1.msra.mxu0 0.0
    %455 = vmatprep.subr.mxu0 0.0
    %456 = vmatpush1.msra.mxu0 0.0
    %457 = vmatprep.subr.mxu0 0.0
    %458 = vmatpush1.msra.mxu0 0.0
    %459 = vmatprep.subr.mxu0 0.0
    %460 = vmatpush1.msra.mxu0 0.0
    %461 = vmatprep.subr.mxu0 0.0
    %462 = vmatpush1.msra.mxu0 0.0
    %463 = vmatprep.subr.mxu0 0.0
    %464 = vmatpush1.msra.mxu0 0.0
    %465 = vmatprep.subr.mxu0 0.0
    %466 = vmatpush1.msra.mxu0 0.0
    %467 = vmatprep.subr.mxu0 0.0
    %468 = vmatpush1.msra.mxu0 0.0
    %469 = vmatprep.subr.mxu0 0.0
    %470 = vmatpush1.msra.mxu0 0.0
    %471 = vmatprep.subr.mxu0 0.0
    %472 = vmatpush1.msra.mxu0 0.0
    %473 = vmatprep.subr.mxu0 0.0
    %474 = vmatpush1.msra.mxu0 0.0
    %475 = vmatprep.subr.mxu0 0.0
    %476 = vmatpush1.msra.mxu0 0.0
    %477 = vmatprep.subr.mxu0 0.0
    %478 = vmatpush1.msra.mxu0 0.0
    %479 = vmatprep.subr.mxu0 0.0
    %480 = vmatpush1.msra.mxu0 0.0
    %481 = vmatprep.subr.mxu0 0.0
    %482 = vmatpush1.msra.mxu0 0.0
    %483 = vmatprep.subr.mxu0 0.0
    %484 = vmatpush1.msra.mxu0 0.0
    %485 = vmatprep.subr.mxu0 0.0
    %486 = vmatpush1.msra.mxu0 0.0
    %487 = vmatprep.subr.mxu0 0.0
    %488 = vmatpush1.msra.mxu0 0.0
    %489 = vmatprep.subr.mxu0 0.0
    %490 = vmatpush1.msra.mxu0 0.0
    %491 = vmatprep.subr.mxu0 0.0
    %492 = vmatpush1.msra.mxu0 0.0
    %493 = vmatprep.subr.mxu0 0.0
    %494 = vmatpush1.msra.mxu0 0.0
    %495 = vmatprep.subr.mxu0 0.0
    %496 = vmatpush1.msra.mxu0 0.0
    %497 = vmatprep.subr.mxu0 0.0
    %498 = vmatpush1.msra.mxu0 0.0
    %499 = vmatprep.subr.mxu0 0.0
    %500 = vmatpush1.msra.mxu0 0.0
    %501 = vmatprep.subr.mxu0 0.0
    %502 = vmatpush1.msra.mxu0 0.0
    %503 = vmatprep.subr.mxu0 0.0
    %504 = vmatpush1.msra.mxu0 0.0
    %505 = vmatprep.subr.mxu0 0.0
    %506 = vmatpush1.msra.mxu0 0.0
    %507 = vmatprep.subr.mxu0 0.0
    %508 = vmatpush1.msra.mxu0 0.0
    %509 = vmatprep.subr.mxu0 0.0
    %510 = vmatpush1.msra.mxu0 0.0
    %511 = vmatprep.mubr.f32.mxu0 0.0
    %v512 = vand.u32 %v57, 4294901760
    %513 = vmatmul.mubr.f32.gmra.mrb[0].mxu0 %v512
    %v514 = vpop.f32.mrb[0].mxu0
    %v515 = vadd.f32 %v442, %v514
    %v516 = vpop.f32.mrb[0].mxu0
    %517 = vdwg.mxu0
    %518 = vst [vmem:[#allocation7] sm:$0xff] %v515
    // Predicated region
    $region18: #{tpu_custom_call.1} parent=1 // pred_check
      _
    $region19: #{tpu_custom_call.1} parent=1 // pred_check_branch
      %520 = sbr.rel (0) target = $region21
    $region20: #{tpu_custom_call.1} parent=1 // pred_region
      %s522 = ssub.s32 128, 128
      %523 = vsyncadd [#allocation4], %s522
      %s525 = sshll.u32 [#allocation7], 4
      %s526 = int_to_ptr.vmem [resolvable:$true] %s525
      %528 = dma.vmem_to_hbm [thread:$0]  %s526, 128, %s2, [#allocation4]
    $region21: #{tpu_custom_call.1} parent=1 // pred_fallthru
      _
    // Predicated region
    $region22: #{tpu_custom_call.1} parent=1 // pred_check
      _
    $region23: #{tpu_custom_call.1} parent=1 // pred_check_branch
      %530 = sbr.rel (0) target = $region25
    $region24: #{tpu_custom_call.1} parent=1 // pred_region
      %531 = dma.done [#allocation4], 128
    $region25: #{tpu_custom_call.1} parent=1 // pred_fallthru
      _
    %532 = vsyncpa [#allocation3], 1
    %533 = vsyncpa [#allocation6], 1
    %534 = vsyncpa [#allocation4], 1

</llo_original>
